<compile_context>
chip_gen: v5e
topology: v5e:2x2
jax: 0.10.0
libtpu: 0.0.40
codegen_flags: <defaults>
</compile_context>

<pallas_src>
import jax
import jax.numpy as jnp
from jax.experimental import pallas as pl
from jax.experimental.pallas import tpu as pltpu


_LANES = 128
_SUBLANES = 8
_WIDTHS = (1024, 512, 256, 128)          # preferred lane-dense slab widths
_TILE_BYTES_TARGET = 4 * 1024 * 1024     # ~4 MiB tile: 2in+2out bufs = 16 MiB
_MIN_TILES = 4                           # keep >=4 tiles for megacore/pipeline
_MIN_PALLAS_ELEMENTS = 2 * 1024 * 1024   # below this, plain XLA elementwise
_VMEM_LIMIT_BYTES = 32 * 1024 * 1024     # safe on v5e/v6e/v7x


def _shift_kernel(amt_ref, x_ref, o_ref):
    # amt_ref: (1,) scalar in SMEM; broadcast scalar add on the VPU.
    o_ref[...] = x_ref[...] + amt_ref[0].astype(x_ref.dtype)


def _choose_tile_rows(rows, width, itemsize):
    """Pick a sublane-aligned tile height; keep >= _MIN_TILES grid steps."""
    sublane = max(_SUBLANES, 32 // max(itemsize, 1))   # 8 f32 / 16 bf16 / 32 i8
    if rows <= sublane:
        return rows                                    # full-extent block
    tile_r = max(1, _TILE_BYTES_TARGET // (width * itemsize))
    tile_r = min(tile_r, rows // _MIN_TILES)
    tile_r = max((tile_r // sublane) * sublane, sublane)
    return min(tile_r, rows)


def _shift_2d(x2d, amount_smem, out_dtype, n_elements):
    rows, width = x2d.shape
    itemsize = jnp.dtype(out_dtype).itemsize
    tile_r = _choose_tile_rows(rows, width, itemsize)
    grid = (pl.cdiv(rows, tile_r),)

    return pl.pallas_call(
        _shift_kernel,
        out_shape=jax.ShapeDtypeStruct((rows, width), out_dtype),
        grid=grid,
        in_specs=[
            pl.BlockSpec(memory_space=pltpu.MemorySpace.SMEM),   # amount
            pl.BlockSpec((tile_r, width), lambda i: (i, 0)),     # x tile
        ],
        out_specs=pl.BlockSpec((tile_r, width), lambda i: (i, 0)),
        compiler_params=pltpu.CompilerParams(
            dimension_semantics=("parallel",),    # shard tiles across TCs
            vmem_limit_bytes=_VMEM_LIMIT_BYTES,
        ),
        cost_estimate=pl.CostEstimate(
            flops=n_elements,
            transcendentals=0,
            bytes_accessed=2 * n_elements * itemsize,
        ),
    )(amount_smem, x2d)


def shift(x: jax.Array, amount, *, force_pallas: bool = False) -> jax.Array:
    """Pallas equivalent of Shift(amount).forward(x)."""
    # dtype promotion matching torch weak-scalar semantics:
    # int tensor + python float -> float32; float/bf16 tensor keeps its dtype.
    out_dtype = jnp.result_type(x.dtype, amount)
    x = x.astype(out_dtype)

    n = x.size
    if n == 0:
        return x
    if n < _MIN_PALLAS_ELEMENTS and not force_pallas:
        # Launch overhead + lost fusion dominate here; let XLA handle it.
        return x + amount

    orig_shape = x.shape
    flat = x.reshape(-1)                       # bitcast view, free

    itemsize = jnp.dtype(out_dtype).itemsize
    # SMEM holds 32-bit scalars; pass `amount` at 32-bit width and cast
    # in-kernel for narrower tensor dtypes.
    smem_dtype = out_dtype if itemsize == 4 else jnp.float32
    amount_smem = jnp.asarray(amount, dtype=smem_dtype).reshape(1)

    # Widest lane-dense slab width that divides n exactly -> no pad, no slice.
    width = next((w for w in _WIDTHS if n % w == 0), None)

    if width is not None:
        out2d = _shift_2d(flat.reshape(n // width, width),
                          amount_smem, out_dtype, n)
        return out2d.reshape(orig_shape)

    # Truly ragged size (not a multiple of 128): Pallas on the aligned prefix,
    # XLA on the small tail.  No full-array pad round trip.
    width = _WIDTHS[0]
    main_n = (n // width) * width
    if main_n == 0:
        return x + amount
    head = _shift_2d(flat[:main_n].reshape(main_n // width, width),
                     amount_smem, out_dtype, main_n).reshape(-1)
    tail = flat[main_n:] + jnp.asarray(amount, dtype=out_dtype)
    return jnp.concatenate([head, tail]).reshape(orig_shape)


if __name__ == "__main__":
    key = jax.random.PRNGKey(0)
    amount = 3.5

    # Small NCHW input consistent with the module: batch=2, channels=4, 16x16.
    x = jax.random.normal(key, (2, 4, 16, 16), dtype=jnp.float32)

    # Force the Pallas path even at this small size so the kernel compiles
    # and runs on the TPU.
    y = jax.block_until_ready(shift(x, amount, force_pallas=True))
    ref = x + amount
    assert y.shape == x.shape and y.dtype == x.dtype
    assert jnp.allclose(y, ref, atol=1e-6, rtol=1e-6), "mismatch vs reference"

    # Small-size escape hatch (plain XLA path).
    y2 = jax.block_until_ready(shift(x, amount))
    assert jnp.allclose(y2, ref, atol=1e-6, rtol=1e-6), "escape-hatch mismatch"

    # Moderately sized input to exercise the multi-tile grid path
    # (rows=512 @ width=1024 -> 4 parallel tiles).
    x_big = jax.random.normal(jax.random.PRNGKey(1), (8, 64, 64, 16),
                              dtype=jnp.float32)
    y_big = jax.block_until_ready(shift(x_big, amount, force_pallas=True))
    assert jnp.allclose(y_big, x_big + amount, atol=1e-6, rtol=1e-6), \
        "multi-tile mismatch"

    print("KERNEL_OK")
</pallas_src>

<mosaic_0001>
module attributes {stable_mosaic.version = 11 : i64} {
  func.func @_shift_kernel(%arg0: i32, %arg1: memref<1xf32, #tpu.memory_space<smem>>, %arg2: memref<2x1024xf32, #tpu.memory_space<vmem>>, %arg3: memref<2x1024xf32, #tpu.memory_space<vmem>>) attributes {dimension_semantics = [#tpu.dimension_semantics<parallel>], iteration_bounds = array<i64: 1>, scalar_prefetch = 0 : i64, scratch_operands = 0 : i64, tpu.core_type = #tpu.core_type<tc>, window_params = [{transform_indices = @transform_0, window_bounds = array<i64: 1>}, {transform_indices = @transform_1, window_bounds = array<i64: 2, 1024>}, {transform_indices = @transform_2, window_bounds = array<i64: 2, 1024>}]} {
    %c0 = arith.constant 0 : index
    %c0_0 = arith.constant 0 : index
    %0 = vector.load %arg2[%c0, %c0_0] : memref<2x1024xf32, #tpu.memory_space<vmem>>, vector<2x1024xf32>
    %c0_1 = arith.constant 0 : index
    %1 = memref.load %arg1[%c0_1] : memref<1xf32, #tpu.memory_space<smem>>
    %2 = vector.broadcast %1 : f32 to vector<2x1024xf32>
    %3 = arith.addf %0, %2 : vector<2x1024xf32>
    %c0_2 = arith.constant 0 : index
    %c0_3 = arith.constant 0 : index
    %4 = vector.load %arg3[%c0_2, %c0_3] : memref<2x1024xf32, #tpu.memory_space<vmem>>, vector<2x1024xf32>
    tpu.vector_store %arg3[%c0_2, %c0_3], %3 {strides = array<i32>} : memref<2x1024xf32, #tpu.memory_space<vmem>>, vector<2x1024xf32>,
    return
  }
  func.func @transform_0(%arg0: i32) -> i32 {
    %c0_i32 = arith.constant 0 : i32
    %c0_i32_0 = arith.constant 0 : i32
    return %c0_i32 : i32
  }
  func.func @transform_1(%arg0: i32) -> (i32, i32) {
    %c0_i32 = arith.constant 0 : i32
    %c0_i32_0 = arith.constant 0 : i32
    return %arg0, %c0_i32 : i32, i32
  }
  func.func @transform_2(%arg0: i32) -> (i32, i32) {
    %c0_i32 = arith.constant 0 : i32
    %c0_i32_0 = arith.constant 0 : i32
    return %arg0, %c0_i32 : i32, i32
  }
}

</mosaic_0001>

<llo_original>
// kernel: tpu_custom_call.1
$region0: #{tpu_custom_call.1}
  #allocation0 [shape = 'u32[]', space=smem, size = 0x4, offset = 0x4, fixed_abs, tag = 'smem constant byte address 0x4 - core index']
  #allocation1 [shape = 'u32[72,128]{1,0:T(1,128)}', space=vmem, size = 0x9000, scoped, tag = 'internal scratch']
  #allocation2 [shape = 'f32[1]{0:T(128)S(6)}', space=smem, size = 0x200, scoped, tag = 'scoped memory for tpu_custom_call.1']
  %s0 = inlined_call_operand.<no memory space> [shape: f32[1], index: 0, kind: input, shape index: {}]
  %s1 = inlined_call_operand.hbm [shape: f32[2,1024], index: 1, kind: input, shape index: {}]
  %s2 = inlined_call_operand.hbm [shape: f32[2,1024], index: 2, kind: output, shape index: {}]
  %s3 = sld [smem:[#allocation0]]
  $region22: #{tpu_custom_call.1} parent=0
    _
  %s5 = ssub.s32 1, %s3
  %s6 = scalar_select 0, %s5, %s3
  %7 = sst [smem:[#allocation2]] %s0
  $region1: #{tpu_custom_call.1} parent=0
    #allocation3 [shape = 'u8[8192]{0}', space=vmem, size = 0x2000, scoped, tag = 'input window, operand 1, single buffered']
    #allocation4 [shape = 's32[1]{0}', space=sflag, size = 0x4, scoped, tag = 'scoped memory for tpu_custom_call.1']
    #allocation5 [shape = 's32[1]{0}', space=sflag, size = 0x4, scoped, tag = 'scoped memory for tpu_custom_call.1']
    #allocation6 [shape = 'u8[8192]{0}', space=vmem, size = 0x2000, scoped, tag = 'output window, operand 0, single buffered']
    %8 = vsyncpa [#allocation4], 0
    %9 = vsyncpa [#allocation5], 0
    // Predicated region
    $region2: #{tpu_custom_call.1} parent=1 // pred_check
      _
    $region3: #{tpu_custom_call.1} parent=1 // pred_check_branch
      %11 = sbr.rel (0) target = $region5
    $region4: #{tpu_custom_call.1} parent=1 // pred_region
      _
    $region5: #{tpu_custom_call.1} parent=1 // pred_fallthru
      _
    // Predicated region
    $region6: #{tpu_custom_call.1} parent=1 // pred_check
      _
    $region7: #{tpu_custom_call.1} parent=1 // pred_check_branch
      %13 = sbr.rel (0) target = $region9
    $region8: #{tpu_custom_call.1} parent=1 // pred_region
      %15 = vsyncadd [#allocation4], 0
      %s17 = sshll.u32 %s1, 4
      %s18 = int_to_ptr.hbm [resolvable:$true] %s17
      %s19 = sshll.u32 [#allocation3], 4
      %s20 = int_to_ptr.vmem [resolvable:$true] %s19
      %22 = dma.hbm_to_vmem [thread:$0]  %s18, 256, %s20, [#allocation4]
    $region9: #{tpu_custom_call.1} parent=1 // pred_fallthru
      _
    // Predicated region
    $region10: #{tpu_custom_call.1} parent=1 // pred_check
      _
    $region11: #{tpu_custom_call.1} parent=1 // pred_check_branch
      %24 = sbr.rel (0) target = $region13
    $region12: #{tpu_custom_call.1} parent=1 // pred_region
      %26 = dma.done [#allocation4], 256
    $region13: #{tpu_custom_call.1} parent=1 // pred_fallthru
      _
    %v27 = vld [vmem:[#allocation3] sm:$0xff]
    %v28 = vld [vmem:[#allocation3 + $0x8] sm:$0xff]
    %s29 = sld [smem:[#allocation2]]
    %v30 = vstv %s29
    %v31 = vadd.f32 %v27, %v30
    %v32 = vadd.f32 %v28, %v30
    %33 = vst [vmem:[#allocation6] sm:$0xff] %v31
    %34 = vst [vmem:[#allocation6 + $0x8] sm:$0xff] %v32
    // Predicated region
    $region14: #{tpu_custom_call.1} parent=1 // pred_check
      _
    $region15: #{tpu_custom_call.1} parent=1 // pred_check_branch
      %36 = sbr.rel (0) target = $region17
    $region16: #{tpu_custom_call.1} parent=1 // pred_region
      %38 = vsyncadd [#allocation5], 0
      %s40 = sshll.u32 [#allocation6], 4
      %s41 = int_to_ptr.vmem [resolvable:$true] %s40
      %s42 = sshll.u32 %s2, 4
      %s43 = int_to_ptr.hbm [resolvable:$true] %s42
      %45 = dma.vmem_to_hbm [thread:$0]  %s41, 256, %s43, [#allocation5]
    $region17: #{tpu_custom_call.1} parent=1 // pred_fallthru
      _
    // Predicated region
    $region18: #{tpu_custom_call.1} parent=1 // pred_check
      _
    $region19: #{tpu_custom_call.1} parent=1 // pred_check_branch
      %47 = sbr.rel (0) target = $region21
    $region20: #{tpu_custom_call.1} parent=1 // pred_region
      %49 = dma.done [#allocation5], 256
    $region21: #{tpu_custom_call.1} parent=1 // pred_fallthru
      _
    %50 = vsyncpa [#allocation4], 1
    %51 = vsyncpa [#allocation5], 1

</llo_original>
